<compile_context>
chip_gen: v5e
topology: v5e:2x2
jax: 0.10.0
libtpu: 0.0.40
codegen_flags: <defaults>
</compile_context>

<pallas_src>
import jax
import jax.numpy as jnp
from jax import lax
from jax.experimental import pallas as pl
from jax.experimental.pallas import tpu as pltpu


def supervisor_kernel(x_ref, wih_ref, whh_ref, b_ref, fcw_ref, fcb_ref,
                      out_ref, gx_ref, h_ref, c_ref):
    # x_ref:   (T, Bb, H)   bf16 time-major input block
    # wih_ref: (L, H, 4H)   bf16 input->gates weights (pre-transposed)
    # whh_ref: (L, H, 4H)   bf16 hidden->gates weights (pre-transposed)
    # b_ref:   (L, 1, 4H)   f32 combined bias (b_ih + b_hh)
    # fcw_ref: (H, H)       bf16 final linear weight (W.T)
    # fcb_ref: (1, H)       f32 final linear bias
    # out_ref: (T, Bb, H)   f32 output; doubles as the inter-layer buffer
    # gx_ref:  (T, Bb, 4H)  f32 scratch: precomputed input projection + bias
    # h_ref/c_ref: (Bb, H)  f32 scratch: recurrent state
    T, B, H = x_ref.shape
    L = wih_ref.shape[0]
    H4 = 4 * H

    for layer in range(L):                               # static, unrolled
        # ---- one large MXU matmul: input projection for every timestep ----
        if layer == 0:
            seq_in = x_ref[...]                          # bf16, no staging copy
        else:
            seq_in = out_ref[...].astype(jnp.bfloat16)   # previous layer's h
        gx = jnp.dot(seq_in.reshape(T * B, H), wih_ref[layer],
                     preferred_element_type=jnp.float32)     # (T*B, 4H) f32
        gx_ref[...] = gx.reshape(T, B, H4) + b_ref[layer]    # bias folded once

        w_hh = whh_ref[layer]                            # (H, 4H) bf16
        h_ref[...] = jnp.zeros_like(h_ref)
        c_ref[...] = jnp.zeros_like(c_ref)
        is_last = layer == (L - 1)

        def step(t, _):
            # per-step work is only the recurrent matmul + gate math
            gates = gx_ref[t] + jnp.dot(
                h_ref[...].astype(jnp.bfloat16), w_hh,
                preferred_element_type=jnp.float32)      # (Bb, 4H) f32
            # note: with H a multiple of 128 these slices fall on lane-tile
            # boundaries and are free vreg selections.
            i = jax.nn.sigmoid(gates[:, 0 * H:1 * H])
            f = jax.nn.sigmoid(gates[:, 1 * H:2 * H])
            g = jnp.tanh(gates[:, 2 * H:3 * H])
            o = jax.nn.sigmoid(gates[:, 3 * H:4 * H])
            c_new = f * c_ref[...] + i * g
            h_new = o * jnp.tanh(c_new)
            c_ref[...] = c_new
            h_ref[...] = h_new
            if is_last:
                # fused Linear + ReLU on the last layer's hidden state
                y = (jnp.dot(h_new.astype(jnp.bfloat16), fcw_ref[...],
                             preferred_element_type=jnp.float32)
                     + fcb_ref[...])
                out_ref[t] = jnp.maximum(y, 0.0)
            else:
                out_ref[t] = h_new
            return 0

        lax.fori_loop(0, T, step, 0)


def supervisor_forward(x, w_ih, w_hh, b_ih, b_hh, fc_w, fc_b):
    """x: (B, T, H) batch_first, like the PyTorch module. Returns (B, T, H) f32."""
    B, T, H = x.shape
    L = w_ih.shape[0]

    # time-major, bf16 activations/weights (f32 accumulation inside the kernel)
    x_tm = jnp.transpose(x, (1, 0, 2)).astype(jnp.bfloat16)          # (T, B, H)
    wih_t = jnp.transpose(w_ih, (0, 2, 1)).astype(jnp.bfloat16)      # (L, H, 4H)
    whh_t = jnp.transpose(w_hh, (0, 2, 1)).astype(jnp.bfloat16)      # (L, H, 4H)
    b = (b_ih + b_hh)[:, None, :].astype(jnp.float32)                # (L, 1, 4H)
    fcw_t = fc_w.T.astype(jnp.bfloat16)                              # (H, H)
    fcb = fc_b[None, :].astype(jnp.float32)                          # (1, H)

    # Batch blocking: each block's recurrence is independent -> "parallel"
    # grid axis (sharded across TensorCores on megacore parts).
    if B % 16 == 0:
        b_blk = 16
    elif B % 8 == 0:
        b_blk = 8
    else:
        b_blk = B
    n_blocks = B // b_blk

    # Rough resident-VMEM estimate -> explicit limit (default scoped limit is
    # well below physical VMEM on v5e/v6e).
    est = (2 * T * b_blk * H * 2            # x block, bf16, double-buffered
           + 2 * T * b_blk * H * 4          # out block, f32, double-buffered
           + 2 * 2 * L * H * 4 * H * 2      # W_ih + W_hh, bf16, double-buffered
           + 2 * L * 4 * H * 4              # bias
           + 2 * (H * H * 2 + H * 4)        # fc weight + bias
           + T * b_blk * 4 * H * 4          # gx scratch (f32)
           + 2 * b_blk * H * 4)             # h, c scratch
    vmem_limit = int(min(max(2 * est, 32 * 1024 * 1024), 64 * 1024 * 1024))

    out_tm = pl.pallas_call(
        supervisor_kernel,
        out_shape=jax.ShapeDtypeStruct((T, B, H), jnp.float32),
        grid=(n_blocks,),
        in_specs=[
            pl.BlockSpec((T, b_blk, H), lambda i: (0, i, 0)),
            pl.BlockSpec((L, H, 4 * H), lambda i: (0, 0, 0)),
            pl.BlockSpec((L, H, 4 * H), lambda i: (0, 0, 0)),
            pl.BlockSpec((L, 1, 4 * H), lambda i: (0, 0, 0)),
            pl.BlockSpec((H, H), lambda i: (0, 0)),
            pl.BlockSpec((1, H), lambda i: (0, 0)),
        ],
        out_specs=pl.BlockSpec((T, b_blk, H), lambda i: (0, i, 0)),
        scratch_shapes=[
            pltpu.VMEM((T, b_blk, 4 * H), jnp.float32),   # precomputed gates
            pltpu.VMEM((b_blk, H), jnp.float32),          # h state
            pltpu.VMEM((b_blk, H), jnp.float32),          # c state
        ],
        compiler_params=pltpu.CompilerParams(
            dimension_semantics=("parallel",),
            vmem_limit_bytes=vmem_limit),
    )(x_tm, wih_t, whh_t, b, fcw_t, fcb)

    return jnp.transpose(out_tm, (1, 0, 2))               # back to (B, T, H)


def ref_forward(x, w_ih, w_hh, b_ih, b_hh, fc_w, fc_b):
    """Pure-JAX f32 reference mirroring torch.nn.LSTM + Linear + ReLU."""
    B, T, H = x.shape
    L = w_ih.shape[0]
    seq = x.astype(jnp.float32)
    for l in range(L):
        def step(carry, x_t):
            h, c = carry
            gates = x_t @ w_ih[l].T + b_ih[l] + h @ w_hh[l].T + b_hh[l]
            i, f, g, o = jnp.split(gates, 4, axis=-1)
            i = jax.nn.sigmoid(i)
            f = jax.nn.sigmoid(f)
            g = jnp.tanh(g)
            o = jax.nn.sigmoid(o)
            c = f * c + i * g
            h = o * jnp.tanh(c)
            return (h, c), h

        h0 = jnp.zeros((B, H), jnp.float32)
        c0 = jnp.zeros((B, H), jnp.float32)
        _, ys = lax.scan(step, (h0, c0), jnp.transpose(seq, (1, 0, 2)))
        seq = jnp.transpose(ys, (1, 0, 2))
    y = seq @ fc_w.T + fc_b
    return jnp.maximum(y, 0.0)


if __name__ == "__main__":
    B, T, H, L = 2, 8, 32, 2

    key = jax.random.PRNGKey(0)
    keys = jax.random.split(key, 7)
    k = 1.0 / jnp.sqrt(H)  # PyTorch-style uniform(-1/sqrt(H), 1/sqrt(H)) init

    x = jax.random.normal(keys[0], (B, T, H), jnp.float32)
    w_ih = jax.random.uniform(keys[1], (L, 4 * H, H), jnp.float32, -k, k)
    w_hh = jax.random.uniform(keys[2], (L, 4 * H, H), jnp.float32, -k, k)
    b_ih = jax.random.uniform(keys[3], (L, 4 * H), jnp.float32, -k, k)
    b_hh = jax.random.uniform(keys[4], (L, 4 * H), jnp.float32, -k, k)
    fc_w = jax.random.uniform(keys[5], (H, H), jnp.float32, -k, k)
    fc_b = jax.random.uniform(keys[6], (H,), jnp.float32, -k, k)

    out = supervisor_forward(x, w_ih, w_hh, b_ih, b_hh, fc_w, fc_b)
    out = jax.block_until_ready(out)

    ref = ref_forward(x, w_ih, w_hh, b_ih, b_hh, fc_w, fc_b)
    assert out.shape == (B, T, H)
    err = float(jnp.max(jnp.abs(out - ref)))
    # bf16 matmuls with f32 accumulation vs f32 reference -> loose tolerance
    assert err < 5e-2, f"mismatch vs reference, max abs err = {err}"

    print("KERNEL_OK")
</pallas_src>

<mosaic_0001>
module attributes {stable_mosaic.version = 11 : i64} {
  func.func @supervisor_kernel(%arg0: i32, %arg1: memref<8x2x32xbf16, #tpu.memory_space<vmem>>, %arg2: memref<2x32x128xbf16, #tpu.memory_space<vmem>>, %arg3: memref<2x32x128xbf16, #tpu.memory_space<vmem>>, %arg4: memref<2x1x128xf32, #tpu.memory_space<vmem>>, %arg5: memref<32x32xbf16, #tpu.memory_space<vmem>>, %arg6: memref<1x32xf32, #tpu.memory_space<vmem>>, %arg7: memref<8x2x32xf32, #tpu.memory_space<vmem>>, %arg8: memref<8x2x128xf32, #tpu.memory_space<vmem>>, %arg9: memref<2x32xf32, #tpu.memory_space<vmem>>, %arg10: memref<2x32xf32, #tpu.memory_space<vmem>>) attributes {dimension_semantics = [#tpu.dimension_semantics<parallel>], iteration_bounds = array<i64: 1>, scalar_prefetch = 0 : i64, scratch_operands = 3 : i64, tpu.core_type = #tpu.core_type<tc>, window_params = [{transform_indices = @transform_0, window_bounds = array<i64: 8, 2, 32>}, {pipeline_mode = #tpu.pipeline_mode<synchronous>, transform_indices = @transform_1, window_bounds = array<i64: 2, 32, 128>}, {pipeline_mode = #tpu.pipeline_mode<synchronous>, transform_indices = @transform_2, window_bounds = array<i64: 2, 32, 128>}, {pipeline_mode = #tpu.pipeline_mode<synchronous>, transform_indices = @transform_3, window_bounds = array<i64: 2, 1, 128>}, {pipeline_mode = #tpu.pipeline_mode<synchronous>, transform_indices = @transform_4, window_bounds = array<i64: 32, 32>}, {pipeline_mode = #tpu.pipeline_mode<synchronous>, transform_indices = @transform_5, window_bounds = array<i64: 1, 32>}, {transform_indices = @transform_6, window_bounds = array<i64: 8, 2, 32>}]} {
    %c0 = arith.constant 0 : index
    %c0_0 = arith.constant 0 : index
    %c0_1 = arith.constant 0 : index
    %0 = vector.load %arg1[%c0, %c0_0, %c0_1] : memref<8x2x32xbf16, #tpu.memory_space<vmem>>, vector<8x2x32xbf16>
    %1 = vector.shape_cast %0 : vector<8x2x32xbf16> to vector<16x32xbf16>
    %c0_2 = arith.constant 0 : index
    %c0_3 = arith.constant 0 : index
    %c0_4 = arith.constant 0 : index
    %2 = vector.load %arg2[%c0_2, %c0_3, %c0_4] : memref<2x32x128xbf16, #tpu.memory_space<vmem>>, vector<1x32x128xbf16>
    %3 = vector.shape_cast %2 : vector<1x32x128xbf16> to vector<32x128xbf16>
    %cst = arith.constant dense<0.000000e+00> : vector<16x128xf32>
    %4 = tpu.matmul %1, %3, %cst {dimension_numbers = #tpu.dot_dimension_numbers<[1], [0], [0], [1], [0, 0, 1, 1], [], []>} : vector<16x32xbf16>, vector<32x128xbf16>, vector<16x128xf32> -> vector<16x128xf32>
    %5 = vector.shape_cast %4 : vector<16x128xf32> to vector<8x2x128xf32>
    %c0_5 = arith.constant 0 : index
    %c0_6 = arith.constant 0 : index
    %c0_7 = arith.constant 0 : index
    %6 = vector.load %arg4[%c0_5, %c0_6, %c0_7] : memref<2x1x128xf32, #tpu.memory_space<vmem>>, vector<1x1x128xf32>
    %7 = vector.shape_cast %6 : vector<1x1x128xf32> to vector<1x128xf32>
    %8 = vector.shape_cast %7 : vector<1x128xf32> to vector<1x1x128xf32>
    %9 = vector.broadcast %8 : vector<1x1x128xf32> to vector<8x2x128xf32>
    %10 = arith.addf %5, %9 : vector<8x2x128xf32>
    %c0_8 = arith.constant 0 : index
    %c0_9 = arith.constant 0 : index
    %c0_10 = arith.constant 0 : index
    %11 = vector.load %arg8[%c0_8, %c0_9, %c0_10] : memref<8x2x128xf32, #tpu.memory_space<vmem>>, vector<8x2x128xf32>
    tpu.vector_store %arg8[%c0_8, %c0_9, %c0_10], %10 {strides = array<i32>} : memref<8x2x128xf32, #tpu.memory_space<vmem>>, vector<8x2x128xf32>,
    %c0_11 = arith.constant 0 : index
    %c0_12 = arith.constant 0 : index
    %c0_13 = arith.constant 0 : index
    %12 = vector.load %arg3[%c0_11, %c0_12, %c0_13] : memref<2x32x128xbf16, #tpu.memory_space<vmem>>, vector<1x32x128xbf16>
    %13 = vector.shape_cast %12 : vector<1x32x128xbf16> to vector<32x128xbf16>
    %cst_14 = arith.constant 0.000000e+00 : f32
    %14 = vector.broadcast %cst_14 : f32 to vector<2x32xf32>
    %c0_15 = arith.constant 0 : index
    %c0_16 = arith.constant 0 : index
    %15 = vector.load %arg9[%c0_15, %c0_16] : memref<2x32xf32, #tpu.memory_space<vmem>>, vector<2x32xf32>
    tpu.vector_store %arg9[%c0_15, %c0_16], %14 {strides = array<i32>} : memref<2x32xf32, #tpu.memory_space<vmem>>, vector<2x32xf32>,
    %cst_17 = arith.constant 0.000000e+00 : f32
    %16 = vector.broadcast %cst_17 : f32 to vector<2x32xf32>
    %c0_18 = arith.constant 0 : index
    %c0_19 = arith.constant 0 : index
    %17 = vector.load %arg10[%c0_18, %c0_19] : memref<2x32xf32, #tpu.memory_space<vmem>>, vector<2x32xf32>
    tpu.vector_store %arg10[%c0_18, %c0_19], %16 {strides = array<i32>} : memref<2x32xf32, #tpu.memory_space<vmem>>, vector<2x32xf32>,
    %c0_i32 = arith.constant 0 : i32
    %c8_i32 = arith.constant 8 : i32
    %18 = arith.addi %c0_i32, %c8_i32 : i32
    %c1_i32 = arith.constant 1 : i32
    scf.for %arg11 = %c0_i32 to %18 step %c1_i32  : i32 {
      %39 = arith.index_cast %arg11 : i32 to index
      %c0_46 = arith.constant 0 : index
      %c0_47 = arith.constant 0 : index
      %40 = vector.load %arg8[%39, %c0_46, %c0_47] : memref<8x2x128xf32, #tpu.memory_space<vmem>>, vector<1x2x128xf32>
      %41 = vector.shape_cast %40 : vector<1x2x128xf32> to vector<2x128xf32>
      %c0_48 = arith.constant 0 : index
      %c0_49 = arith.constant 0 : index
      %42 = vector.load %arg9[%c0_48, %c0_49] : memref<2x32xf32, #tpu.memory_space<vmem>>, vector<2x32xf32>
      %43 = arith.truncf %42 : vector<2x32xf32> to vector<2x32xbf16>
      %cst_50 = arith.constant dense<0.000000e+00> : vector<2x128xf32>
      %44 = tpu.matmul %43, %13, %cst_50 {dimension_numbers = #tpu.dot_dimension_numbers<[1], [0], [0], [1], [0, 0, 1, 1], [], []>} : vector<2x32xbf16>, vector<32x128xbf16>, vector<2x128xf32> -> vector<2x128xf32>
      %45 = arith.addf %41, %44 : vector<2x128xf32>
      %46 = vector.extract_strided_slice %45 {offsets = [0, 0], sizes = [2, 32], strides = [1, 1]} : vector<2x128xf32> to vector<2x32xf32>
      %47 = arith.negf %46 : vector<2x32xf32>
      %48 = math.exp %47 : vector<2x32xf32>
      %cst_51 = arith.constant 1.000000e+00 : f32
      %49 = vector.broadcast %cst_51 : f32 to vector<2x32xf32>
      %50 = arith.addf %49, %48 : vector<2x32xf32>
      %51 = arith.divf %49, %50 : vector<2x32xf32>
      %52 = vector.extract_strided_slice %45 {offsets = [0, 32], sizes = [2, 32], strides = [1, 1]} : vector<2x128xf32> to vector<2x32xf32>
      %53 = arith.negf %52 : vector<2x32xf32>
      %54 = math.exp %53 : vector<2x32xf32>
      %cst_52 = arith.constant 1.000000e+00 : f32
      %55 = vector.broadcast %cst_52 : f32 to vector<2x32xf32>
      %56 = arith.addf %55, %54 : vector<2x32xf32>
      %57 = arith.divf %55, %56 : vector<2x32xf32>
      %58 = vector.extract_strided_slice %45 {offsets = [0, 64], sizes = [2, 32], strides = [1, 1]} : vector<2x128xf32> to vector<2x32xf32>
      %59 = math.tanh %58 : vector<2x32xf32>
      %60 = vector.extract_strided_slice %45 {offsets = [0, 96], sizes = [2, 32], strides = [1, 1]} : vector<2x128xf32> to vector<2x32xf32>
      %61 = arith.negf %60 : vector<2x32xf32>
      %62 = math.exp %61 : vector<2x32xf32>
      %cst_53 = arith.constant 1.000000e+00 : f32
      %63 = vector.broadcast %cst_53 : f32 to vector<2x32xf32>
      %64 = arith.addf %63, %62 : vector<2x32xf32>
      %65 = arith.divf %63, %64 : vector<2x32xf32>
      %c0_54 = arith.constant 0 : index
      %c0_55 = arith.constant 0 : index
      %66 = vector.load %arg10[%c0_54, %c0_55] : memref<2x32xf32, #tpu.memory_space<vmem>>, vector<2x32xf32>
      %67 = arith.mulf %57, %66 : vector<2x32xf32>
      %68 = arith.mulf %51, %59 : vector<2x32xf32>
      %69 = arith.addf %67, %68 : vector<2x32xf32>
      %70 = math.tanh %69 : vector<2x32xf32>
      %71 = arith.mulf %65, %70 : vector<2x32xf32>
      %c0_56 = arith.constant 0 : index
      %c0_57 = arith.constant 0 : index
      %72 = vector.load %arg10[%c0_56, %c0_57] : memref<2x32xf32, #tpu.memory_space<vmem>>, vector<2x32xf32>
      tpu.vector_store %arg10[%c0_56, %c0_57], %69 {strides = array<i32>} : memref<2x32xf32, #tpu.memory_space<vmem>>, vector<2x32xf32>,
      %c0_58 = arith.constant 0 : index
      %c0_59 = arith.constant 0 : index
      %73 = vector.load %arg9[%c0_58, %c0_59] : memref<2x32xf32, #tpu.memory_space<vmem>>, vector<2x32xf32>
      tpu.vector_store %arg9[%c0_58, %c0_59], %71 {strides = array<i32>} : memref<2x32xf32, #tpu.memory_space<vmem>>, vector<2x32xf32>,
      %74 = arith.index_cast %arg11 : i32 to index
      %c0_60 = arith.constant 0 : index
      %c0_61 = arith.constant 0 : index
      %75 = vector.load %arg7[%74, %c0_60, %c0_61] : memref<8x2x32xf32, #tpu.memory_space<vmem>>, vector<1x2x32xf32>
      %76 = vector.shape_cast %75 : vector<1x2x32xf32> to vector<2x32xf32>
      %77 = vector.shape_cast %71 : vector<2x32xf32> to vector<1x2x32xf32>
      tpu.vector_store %arg7[%74, %c0_60, %c0_61], %77 {strides = array<i32>} : memref<8x2x32xf32, #tpu.memory_space<vmem>>, vector<1x2x32xf32>,
    }
    %c8_i32_20 = arith.constant 8 : i32
    %c0_21 = arith.constant 0 : index
    %c0_22 = arith.constant 0 : index
    %c0_23 = arith.constant 0 : index
    %19 = vector.load %arg7[%c0_21, %c0_22, %c0_23] : memref<8x2x32xf32, #tpu.memory_space<vmem>>, vector<8x2x32xf32>
    %20 = arith.truncf %19 : vector<8x2x32xf32> to vector<8x2x32xbf16>
    %21 = vector.shape_cast %20 : vector<8x2x32xbf16> to vector<16x32xbf16>
    %c1 = arith.constant 1 : index
    %c0_24 = arith.constant 0 : index
    %c0_25 = arith.constant 0 : index
    %22 = vector.load %arg2[%c1, %c0_24, %c0_25] : memref<2x32x128xbf16, #tpu.memory_space<vmem>>, vector<1x32x128xbf16>
    %23 = vector.shape_cast %22 : vector<1x32x128xbf16> to vector<32x128xbf16>
    %cst_26 = arith.constant dense<0.000000e+00> : vector<16x128xf32>
    %24 = tpu.matmul %21, %23, %cst_26 {dimension_numbers = #tpu.dot_dimension_numbers<[1], [0], [0], [1], [0, 0, 1, 1], [], []>} : vector<16x32xbf16>, vector<32x128xbf16>, vector<16x128xf32> -> vector<16x128xf32>
    %25 = vector.shape_cast %24 : vector<16x128xf32> to vector<8x2x128xf32>
    %c1_27 = arith.constant 1 : index
    %c0_28 = arith.constant 0 : index
    %c0_29 = arith.constant 0 : index
    %26 = vector.load %arg4[%c1_27, %c0_28, %c0_29] : memref<2x1x128xf32, #tpu.memory_space<vmem>>, vector<1x1x128xf32>
    %27 = vector.shape_cast %26 : vector<1x1x128xf32> to vector<1x128xf32>
    %28 = vector.shape_cast %27 : vector<1x128xf32> to vector<1x1x128xf32>
    %29 = vector.broadcast %28 : vector<1x1x128xf32> to vector<8x2x128xf32>
    %30 = arith.addf %25, %29 : vector<8x2x128xf32>
    %c0_30 = arith.constant 0 : index
    %c0_31 = arith.constant 0 : index
    %c0_32 = arith.constant 0 : index
    %31 = vector.load %arg8[%c0_30, %c0_31, %c0_32] : memref<8x2x128xf32, #tpu.memory_space<vmem>>, vector<8x2x128xf32>
    tpu.vector_store %arg8[%c0_30, %c0_31, %c0_32], %30 {strides = array<i32>} : memref<8x2x128xf32, #tpu.memory_space<vmem>>, vector<8x2x128xf32>,
    %c1_33 = arith.constant 1 : index
    %c0_34 = arith.constant 0 : index
    %c0_35 = arith.constant 0 : index
    %32 = vector.load %arg3[%c1_33, %c0_34, %c0_35] : memref<2x32x128xbf16, #tpu.memory_space<vmem>>, vector<1x32x128xbf16>
    %33 = vector.shape_cast %32 : vector<1x32x128xbf16> to vector<32x128xbf16>
    %cst_36 = arith.constant 0.000000e+00 : f32
    %34 = vector.broadcast %cst_36 : f32 to vector<2x32xf32>
    %c0_37 = arith.constant 0 : index
    %c0_38 = arith.constant 0 : index
    %35 = vector.load %arg9[%c0_37, %c0_38] : memref<2x32xf32, #tpu.memory_space<vmem>>, vector<2x32xf32>
    tpu.vector_store %arg9[%c0_37, %c0_38], %34 {strides = array<i32>} : memref<2x32xf32, #tpu.memory_space<vmem>>, vector<2x32xf32>,
    %cst_39 = arith.constant 0.000000e+00 : f32
    %36 = vector.broadcast %cst_39 : f32 to vector<2x32xf32>
    %c0_40 = arith.constant 0 : index
    %c0_41 = arith.constant 0 : index
    %37 = vector.load %arg10[%c0_40, %c0_41] : memref<2x32xf32, #tpu.memory_space<vmem>>, vector<2x32xf32>
    tpu.vector_store %arg10[%c0_40, %c0_41], %36 {strides = array<i32>} : memref<2x32xf32, #tpu.memory_space<vmem>>, vector<2x32xf32>,
    %c0_i32_42 = arith.constant 0 : i32
    %c8_i32_43 = arith.constant 8 : i32
    %38 = arith.addi %c0_i32_42, %c8_i32_43 : i32
    %c1_i32_44 = arith.constant 1 : i32
    scf.for %arg11 = %c0_i32_42 to %38 step %c1_i32_44  : i32 {
      %39 = arith.index_cast %arg11 : i32 to index
      %c0_46 = arith.constant 0 : index
      %c0_47 = arith.constant 0 : index
      %40 = vector.load %arg8[%39, %c0_46, %c0_47] : memref<8x2x128xf32, #tpu.memory_space<vmem>>, vector<1x2x128xf32>
      %41 = vector.shape_cast %40 : vector<1x2x128xf32> to vector<2x128xf32>
      %c0_48 = arith.constant 0 : index
      %c0_49 = arith.constant 0 : index
      %42 = vector.load %arg9[%c0_48, %c0_49] : memref<2x32xf32, #tpu.memory_space<vmem>>, vector<2x32xf32>
      %43 = arith.truncf %42 : vector<2x32xf32> to vector<2x32xbf16>
      %cst_50 = arith.constant dense<0.000000e+00> : vector<2x128xf32>
      %44 = tpu.matmul %43, %33, %cst_50 {dimension_numbers = #tpu.dot_dimension_numbers<[1], [0], [0], [1], [0, 0, 1, 1], [], []>} : vector<2x32xbf16>, vector<32x128xbf16>, vector<2x128xf32> -> vector<2x128xf32>
      %45 = arith.addf %41, %44 : vector<2x128xf32>
      %46 = vector.extract_strided_slice %45 {offsets = [0, 0], sizes = [2, 32], strides = [1, 1]} : vector<2x128xf32> to vector<2x32xf32>
      %47 = arith.negf %46 : vector<2x32xf32>
      %48 = math.exp %47 : vector<2x32xf32>
      %cst_51 = arith.constant 1.000000e+00 : f32
      %49 = vector.broadcast %cst_51 : f32 to vector<2x32xf32>
      %50 = arith.addf %49, %48 : vector<2x32xf32>
      %51 = arith.divf %49, %50 : vector<2x32xf32>
      %52 = vector.extract_strided_slice %45 {offsets = [0, 32], sizes = [2, 32], strides = [1, 1]} : vector<2x128xf32> to vector<2x32xf32>
      %53 = arith.negf %52 : vector<2x32xf32>
      %54 = math.exp %53 : vector<2x32xf32>
      %cst_52 = arith.constant 1.000000e+00 : f32
      %55 = vector.broadcast %cst_52 : f32 to vector<2x32xf32>
      %56 = arith.addf %55, %54 : vector<2x32xf32>
      %57 = arith.divf %55, %56 : vector<2x32xf32>
      %58 = vector.extract_strided_slice %45 {offsets = [0, 64], sizes = [2, 32], strides = [1, 1]} : vector<2x128xf32> to vector<2x32xf32>
      %59 = math.tanh %58 : vector<2x32xf32>
      %60 = vector.extract_strided_slice %45 {offsets = [0, 96], sizes = [2, 32], strides = [1, 1]} : vector<2x128xf32> to vector<2x32xf32>
      %61 = arith.negf %60 : vector<2x32xf32>
      %62 = math.exp %61 : vector<2x32xf32>
      %cst_53 = arith.constant 1.000000e+00 : f32
      %63 = vector.broadcast %cst_53 : f32 to vector<2x32xf32>
      %64 = arith.addf %63, %62 : vector<2x32xf32>
      %65 = arith.divf %63, %64 : vector<2x32xf32>
      %c0_54 = arith.constant 0 : index
      %c0_55 = arith.constant 0 : index
      %66 = vector.load %arg10[%c0_54, %c0_55] : memref<2x32xf32, #tpu.memory_space<vmem>>, vector<2x32xf32>
      %67 = arith.mulf %57, %66 : vector<2x32xf32>
      %68 = arith.mulf %51, %59 : vector<2x32xf32>
      %69 = arith.addf %67, %68 : vector<2x32xf32>
      %70 = math.tanh %69 : vector<2x32xf32>
      %71 = arith.mulf %65, %70 : vector<2x32xf32>
      %c0_56 = arith.constant 0 : index
      %c0_57 = arith.constant 0 : index
      %72 = vector.load %arg10[%c0_56, %c0_57] : memref<2x32xf32, #tpu.memory_space<vmem>>, vector<2x32xf32>
      tpu.vector_store %arg10[%c0_56, %c0_57], %69 {strides = array<i32>} : memref<2x32xf32, #tpu.memory_space<vmem>>, vector<2x32xf32>,
      %c0_58 = arith.constant 0 : index
      %c0_59 = arith.constant 0 : index
      %73 = vector.load %arg9[%c0_58, %c0_59] : memref<2x32xf32, #tpu.memory_space<vmem>>, vector<2x32xf32>
      tpu.vector_store %arg9[%c0_58, %c0_59], %71 {strides = array<i32>} : memref<2x32xf32, #tpu.memory_space<vmem>>, vector<2x32xf32>,
      %74 = arith.truncf %71 : vector<2x32xf32> to vector<2x32xbf16>
      %c0_60 = arith.constant 0 : index
      %c0_61 = arith.constant 0 : index
      %75 = vector.load %arg5[%c0_60, %c0_61] : memref<32x32xbf16, #tpu.memory_space<vmem>>, vector<32x32xbf16>
      %cst_62 = arith.constant dense<0.000000e+00> : vector<2x32xf32>
      %76 = tpu.matmul %74, %75, %cst_62 {dimension_numbers = #tpu.dot_dimension_numbers<[1], [0], [0], [1], [0, 0, 1, 1], [], []>} : vector<2x32xbf16>, vector<32x32xbf16>, vector<2x32xf32> -> vector<2x32xf32>
      %c0_63 = arith.constant 0 : index
      %c0_64 = arith.constant 0 : index
      %77 = vector.load %arg6[%c0_63, %c0_64] : memref<1x32xf32, #tpu.memory_space<vmem>>, vector<1x32xf32>
      %78 = vector.broadcast %77 : vector<1x32xf32> to vector<2x32xf32>
      %79 = arith.addf %76, %78 : vector<2x32xf32>
      %cst_65 = arith.constant 0.000000e+00 : f32
      %80 = vector.broadcast %cst_65 : f32 to vector<2x32xf32>
      %81 = arith.maximumf %79, %80 : vector<2x32xf32>
      %82 = arith.index_cast %arg11 : i32 to index
      %c0_66 = arith.constant 0 : index
      %c0_67 = arith.constant 0 : index
      %83 = vector.load %arg7[%82, %c0_66, %c0_67] : memref<8x2x32xf32, #tpu.memory_space<vmem>>, vector<1x2x32xf32>
      %84 = vector.shape_cast %83 : vector<1x2x32xf32> to vector<2x32xf32>
      %85 = vector.shape_cast %81 : vector<2x32xf32> to vector<1x2x32xf32>
      tpu.vector_store %arg7[%82, %c0_66, %c0_67], %85 {strides = array<i32>} : memref<8x2x32xf32, #tpu.memory_space<vmem>>, vector<1x2x32xf32>,
    }
    %c8_i32_45 = arith.constant 8 : i32
    return
  }
  func.func @transform_0(%arg0: i32) -> (i32, i32, i32) {
    %c0_i32 = arith.constant 0 : i32
    %c0_i32_0 = arith.constant 0 : i32
    %c0_i32_1 = arith.constant 0 : i32
    return %c0_i32, %arg0, %c0_i32_0 : i32, i32, i32
  }
  func.func @transform_1(%arg0: i32) -> (i32, i32, i32) {
    %c0_i32 = arith.constant 0 : i32
    %c0_i32_0 = arith.constant 0 : i32
    %c0_i32_1 = arith.constant 0 : i32
    %c0_i32_2 = arith.constant 0 : i32
    return %c0_i32, %c0_i32_0, %c0_i32_1 : i32, i32, i32
  }
  func.func @transform_2(%arg0: i32) -> (i32, i32, i32) {
    %c0_i32 = arith.constant 0 : i32
    %c0_i32_0 = arith.constant 0 : i32
    %c0_i32_1 = arith.constant 0 : i32
    %c0_i32_2 = arith.constant 0 : i32
    return %c0_i32, %c0_i32_0, %c0_i32_1 : i32, i32, i32
  }
  func.func @transform_3(%arg0: i32) -> (i32, i32, i32) {
    %c0_i32 = arith.constant 0 : i32
    %c0_i32_0 = arith.constant 0 : i32
    %c0_i32_1 = arith.constant 0 : i32
    %c0_i32_2 = arith.constant 0 : i32
    return %c0_i32, %c0_i32_0, %c0_i32_1 : i32, i32, i32
  }
  func.func @transform_4(%arg0: i32) -> (i32, i32) {
    %c0_i32 = arith.constant 0 : i32
    %c0_i32_0 = arith.constant 0 : i32
    %c0_i32_1 = arith.constant 0 : i32
    return %c0_i32, %c0_i32_0 : i32, i32
  }
  func.func @transform_5(%arg0: i32) -> (i32, i32) {
    %c0_i32 = arith.constant 0 : i32
    %c0_i32_0 = arith.constant 0 : i32
    %c0_i32_1 = arith.constant 0 : i32
    return %c0_i32, %c0_i32_0 : i32, i32
  }
  func.func @transform_6(%arg0: i32) -> (i32, i32, i32) {
    %c0_i32 = arith.constant 0 : i32
    %c0_i32_0 = arith.constant 0 : i32
    %c0_i32_1 = arith.constant 0 : i32
    return %c0_i32, %arg0, %c0_i32_0 : i32, i32, i32
  }
}

</mosaic_0001>

<llo_original>
// kernel: tpu_custom_call.1
$region0: #{tpu_custom_call.1}
  #allocation0 [shape = 'u32[]', space=smem, size = 0x4, offset = 0x4, fixed_abs, tag = 'smem constant byte address 0x4 - core index']
  #allocation1 [shape = 'u32[72,128]{1,0:T(1,128)}', space=vmem, size = 0x9000, scoped, tag = 'internal scratch']
  #allocation2 [shape = 'f32[8,2,128]{2,1,0:T(2,128)}', space=vmem, size = 0x2000, scoped, tag = 'scratch operand']
  #allocation3 [shape = 'f32[2,32]{1,0:T(2,128)}', space=vmem, size = 0x400, scoped, tag = 'scratch operand']
  #allocation4 [shape = 'f32[2,32]{1,0:T(2,128)}', space=vmem, size = 0x400, scoped, tag = 'scratch operand']
  %s0 = inlined_call_operand.hbm [shape: bf16[8,2,32], index: 0, kind: input, shape index: {}]
  %s1 = inlined_call_operand.hbm [shape: bf16[2,32,128], index: 1, kind: input, shape index: {}]
  %s2 = inlined_call_operand.hbm [shape: bf16[2,32,128], index: 2, kind: input, shape index: {}]
  %s3 = inlined_call_operand.vmem [shape: f32[2,1,128], index: 3, kind: input, shape index: {}]
  %s4 = inlined_call_operand.hbm [shape: bf16[32,32], index: 4, kind: input, shape index: {}]
  %s5 = inlined_call_operand.vmem [shape: f32[1,32], index: 5, kind: input, shape index: {}]
  %s6 = inlined_call_operand.hbm [shape: f32[8,2,32], index: 6, kind: output, shape index: {}]
  %s7 = sld [smem:[#allocation0]]
  $region64: #{tpu_custom_call.1} parent=0
    _
  %s9 = ssub.s32 1, %s7
  %s10 = scalar_select 0, %s9, %s7
  $region1: #{tpu_custom_call.1} parent=0
    #allocation5 [shape = 'u8[4096]{0}', space=vmem, size = 0x1000, scoped, tag = 'input window, operand 0, single buffered']
    #allocation6 [shape = 's32[1]{0}', space=sflag, size = 0x4, scoped, tag = 'scoped memory for tpu_custom_call.1']
    #allocation7 [shape = 's32[1]{0}', space=sflag, size = 0x4, scoped, tag = 'scoped memory for tpu_custom_call.1']
    #allocation8 [shape = 'u8[16384]{0}', space=vmem, size = 0x4000, scoped, tag = 'input window, operand 1, single buffered']
    #allocation9 [shape = 's32[1]{0}', space=sflag, size = 0x4, scoped, tag = 'scoped memory for tpu_custom_call.1']
    #allocation10 [shape = 'u8[16384]{0}', space=vmem, size = 0x4000, scoped, tag = 'input window, operand 2, single buffered']
    #allocation11 [shape = 'u8[8192]{0}', space=vmem, size = 0x2000, scoped, tag = 'input window, operand 4, single buffered']
    #allocation12 [shape = 's32[1]{0}', space=sflag, size = 0x4, scoped, tag = 'scoped memory for tpu_custom_call.1']
    #allocation13 [shape = 'u8[8192]{0}', space=vmem, size = 0x2000, scoped, tag = 'output window, operand 0, single buffered']
    %11 = vsyncpa [#allocation6], 0
    %12 = vsyncpa [#allocation9], 0
    %13 = vsyncpa [#allocation12], 0
    %14 = vsyncpa [#allocation7], 0
    // Predicated region
    $region2: #{tpu_custom_call.1} parent=1 // pred_check
      _
    $region3: #{tpu_custom_call.1} parent=1 // pred_check_branch
      %16 = sbr.rel (0) target = $region5
    $region4: #{tpu_custom_call.1} parent=1 // pred_region
      %18 = vsyncadd [#allocation6], 0
      %s19 = sshll.u32 %s0, 4
      %s20 = int_to_ptr.hbm [resolvable:$true] %s19
      %s21 = sshll.u32 [#allocation5], 4
      %s22 = int_to_ptr.vmem [resolvable:$true] %s21
      %27 = dma.hbm_to_vmem [thread:$0]  %s20, 128, %s22, [#allocation6], 16, 16, 1
    $region5: #{tpu_custom_call.1} parent=1 // pred_fallthru
      _
    // Predicated region
    $region6: #{tpu_custom_call.1} parent=1 // pred_check
      _
    $region7: #{tpu_custom_call.1} parent=1 // pred_check_branch
      %29 = sbr.rel (0) target = $region9
    $region8: #{tpu_custom_call.1} parent=1 // pred_region
      %31 = vsyncadd [#allocation9], 0
      %s32 = sshll.u32 %s1, 4
      %s33 = int_to_ptr.hbm [resolvable:$true] %s32
      %s34 = sshll.u32 [#allocation8], 4
      %s35 = int_to_ptr.vmem [resolvable:$true] %s34
      %40 = dma.hbm_to_vmem [thread:$0]  %s33, 512, %s35, [#allocation9], 64, 64, 4
    $region9: #{tpu_custom_call.1} parent=1 // pred_fallthru
      _
    // Predicated region
    $region10: #{tpu_custom_call.1} parent=1 // pred_check
      _
    $region11: #{tpu_custom_call.1} parent=1 // pred_check_branch
      %42 = sbr.rel (0) target = $region13
    $region12: #{tpu_custom_call.1} parent=1 // pred_region
      %44 = vsyncadd [#allocation9], 0
      %s45 = sshll.u32 %s2, 4
      %s46 = int_to_ptr.hbm [resolvable:$true] %s45
      %s47 = sshll.u32 [#allocation10], 4
      %s48 = int_to_ptr.vmem [resolvable:$true] %s47
      %53 = dma.hbm_to_vmem [thread:$0]  %s46, 512, %s48, [#allocation9], 64, 64, 4
    $region13: #{tpu_custom_call.1} parent=1 // pred_fallthru
      _
    // Predicated region
    $region14: #{tpu_custom_call.1} parent=1 // pred_check
      _
    $region15: #{tpu_custom_call.1} parent=1 // pred_check_branch
      %55 = sbr.rel (0) target = $region17
    $region16: #{tpu_custom_call.1} parent=1 // pred_region
      _
    $region17: #{tpu_custom_call.1} parent=1 // pred_fallthru
      _
    // Predicated region
    $region18: #{tpu_custom_call.1} parent=1 // pred_check
      _
    $region19: #{tpu_custom_call.1} parent=1 // pred_check_branch
      %57 = sbr.rel (0) target = $region21
    $region20: #{tpu_custom_call.1} parent=1 // pred_region
      %59 = vsyncadd [#allocation12], 0
      %s60 = sshll.u32 %s4, 4
      %s61 = int_to_ptr.hbm [resolvable:$true] %s60
      %s62 = sshll.u32 [#allocation11], 4
      %s63 = int_to_ptr.vmem [resolvable:$true] %s62
      %68 = dma.hbm_to_vmem [thread:$0]  %s61, 256, %s63, [#allocation12], 64, 64, 4
    $region21: #{tpu_custom_call.1} parent=1 // pred_fallthru
      _
    // Predicated region
    $region22: #{tpu_custom_call.1} parent=1 // pred_check
      _
    $region23: #{tpu_custom_call.1} parent=1 // pred_check_branch
      %70 = sbr.rel (0) target = $region25
    $region24: #{tpu_custom_call.1} parent=1 // pred_region
      _
    $region25: #{tpu_custom_call.1} parent=1 // pred_fallthru
      _
    // Predicated region
    $region26: #{tpu_custom_call.1} parent=1 // pred_check
      _
    $region27: #{tpu_custom_call.1} parent=1 // pred_check_branch
      %72 = sbr.rel (0) target = $region29
    $region28: #{tpu_custom_call.1} parent=1 // pred_region
      %74 = dma.done [#allocation6], 128
    $region29: #{tpu_custom_call.1} parent=1 // pred_fallthru
      _
    // Predicated region
    $region30: #{tpu_custom_call.1} parent=1 // pred_check
      _
    $region31: #{tpu_custom_call.1} parent=1 // pred_check_branch
      %76 = sbr.rel (0) target = $region33
    $region32: #{tpu_custom_call.1} parent=1 // pred_region
      %78 = dma.done [#allocation9], 512
    $region33: #{tpu_custom_call.1} parent=1 // pred_fallthru
      _
    // Predicated region
    $region34: #{tpu_custom_call.1} parent=1 // pred_check
      _
    $region35: #{tpu_custom_call.1} parent=1 // pred_check_branch
      %80 = sbr.rel (0) target = $region37
    $region36: #{tpu_custom_call.1} parent=1 // pred_region
      %82 = dma.done [#allocation9], 512
    $region37: #{tpu_custom_call.1} parent=1 // pred_fallthru
      _
    // Predicated region
    $region38: #{tpu_custom_call.1} parent=1 // pred_check
      _
    $region39: #{tpu_custom_call.1} parent=1 // pred_check_branch
      %84 = sbr.rel (0) target = $region41
    $region40: #{tpu_custom_call.1} parent=1 // pred_region
      %86 = dma.done [#allocation12], 256
    $region41: #{tpu_custom_call.1} parent=1 // pred_fallthru
      _
    %v88 = vld [vmem:[#allocation5] sm:$0x1]
    %v89 = vld [vmem:[#allocation5 + $0x1] sm:$0x1]
    %v90 = vld [vmem:[#allocation5 + $0x2] sm:$0x1]
    %v91 = vld [vmem:[#allocation5 + $0x3] sm:$0x1]
    %v92 = vld [vmem:[#allocation5 + $0x4] sm:$0x1]
    %v93 = vld [vmem:[#allocation5 + $0x5] sm:$0x1]
    %v94 = vld [vmem:[#allocation5 + $0x6] sm:$0x1]
    %v95 = vld [vmem:[#allocation5 + $0x7] sm:$0x1]
    %v96 = vld [vmem:[#allocation8] sm:$0xf]
    %v97 = vld [vmem:[#allocation8 + $0x4] sm:$0xf]
    %v98 = vld [vmem:[#allocation8 + $0x8] sm:$0xf]
    %v99 = vld [vmem:[#allocation8 + $0xc] sm:$0xf]
    %101 = vst [vmem:[#allocation1] ss:$9 sm:$0xff] %v88
    %s103 = scalar_lea.vmem [#allocation1], 1
    %104 = vst [vmem:[%s103] ss:$9 sm:$0xff] %v89
    %s106 = scalar_lea.vmem [#allocation1], 2
    %107 = vst [vmem:[%s106] ss:$9 sm:$0xff] %v90
    %s109 = scalar_lea.vmem [#allocation1], 3
    %110 = vst [vmem:[%s109] ss:$9 sm:$0xff] %v91
    %s112 = scalar_lea.vmem [#allocation1], 4
    %113 = vst [vmem:[%s112] ss:$9 sm:$0xff] %v92
    %s115 = scalar_lea.vmem [#allocation1], 5
    %116 = vst [vmem:[%s115] ss:$9 sm:$0xff] %v93
    %s118 = scalar_lea.vmem [#allocation1], 6
    %119 = vst [vmem:[%s118] ss:$9 sm:$0xff] %v94
    %s121 = scalar_lea.vmem [#allocation1], 7
    %122 = vst [vmem:[%s121] ss:$9 sm:$0xff] %v95
    %v123 = vld [vmem:[#allocation1] sm:$0xff]
    %v128 = vunpack.c.l.b16 %v96
    %v129 = vunpack.c.l.b16 %v97
    %v130 = vunpack.c.l.b16 %v98
    %v131 = vunpack.c.l.b16 %v99
    %v132 = vpack.c.b16 %v129, %v128
    %v133 = vpack.c.b16 %v131, %v130
    %vm136 = vcmask 261120
    %v137 = vsel %vm136, %v123, 0
    %139 = vmatpush.bf16.msra.mxu0 0
    %140 = vmatpush.bf16.msra.mxu0 0
    %141 = vmatpush.bf16.msra.mxu0 0
    %142 = vmatpush.bf16.msra.mxu0 0
    %143 = vmatpush.bf16.msra.mxu0 0
    %144 = vmatpush.bf16.msra.mxu0 0
    %145 = vmatpush.bf16.msra.mxu0 %v133
    %146 = vmatpush.bf16.msra.mxu0 %v132
    %147 = vmatmul.bf16.gmra.mxu0 %v137
    %v148 = vpop.f32.mrf.mxu0
    %v149 = vadd.f32 0.0, %v148
    %v150 = vpop.f32.mrf.mxu0
    %v151 = vadd.f32 0.0, %v150
    %152 = vdwg.mxu0
    %v155 = vrot.slane %v149, 2
    %v156 = vrot.slane %v149, 4
    %v157 = vrot.slane %v149, 6
    %v158 = vrot.slane %v151, 2
    %v159 = vrot.slane %v151, 4
    %v160 = vrot.slane %v151, 6
    %v167 = vld [vmem:[%s3] sm:$0x1]
    %v169 = vperm.slane %v167, 0
    %v171 = vadd.f32 %v149, %v169
    %v172 = vadd.f32 %v155, %v169
    %v173 = vadd.f32 %v156, %v169
    %v174 = vadd.f32 %v157, %v169
    %v175 = vadd.f32 %v151, %v169
    %v176 = vadd.f32 %v158, %v169
    %v177 = vadd.f32 %v159, %v169
    %v178 = vadd.f32 %v160, %v169
    %179 = vst [vmem:[#allocation2] sm:$0x3] %v171
    %180 = vst [vmem:[#allocation2 + $0x2] sm:$0x3] %v172
    %181 = vst [vmem:[#allocation2 + $0x4] sm:$0x3] %v173
    %182 = vst [vmem:[#allocation2 + $0x6] sm:$0x3] %v174
    %183 = vst [vmem:[#allocation2 + $0x8] sm:$0x3] %v175
    %184 = vst [vmem:[#allocation2 + $0xa] sm:$0x3] %v176
    %185 = vst [vmem:[#allocation2 + $0xc] sm:$0x3] %v177
    %186 = vst [vmem:[#allocation2 + $0xe] sm:$0x3] %v178
    %v187 = vld [vmem:[#allocation10] sm:$0xf]
    %v188 = vld [vmem:[#allocation10 + $0x4] sm:$0xf]
    %v189 = vld [vmem:[#allocation10 + $0x8] sm:$0xf]
    %v190 = vld [vmem:[#allocation10 + $0xc] sm:$0xf]
    %vm191 = vcmask 254976
    %192 = vst.msk [vmem:[#allocation3] sm:$0x3] %vm191, 0.0
    %193 = vst.msk [vmem:[#allocation4] sm:$0x3] %vm191, 0.0
    loop: start=0, step=1, limit=8
    $region42: #{tpu_custom_call.1} parent=1 // loop_pre_header
      _
    $region43: #{tpu_custom_call.1} parent=1 // loop_header
      %s195 = sphi 0, %s199
      %p196 = scmp.ge.s32.totalorder %s195, 8
    $region44: #{tpu_custom_call.1} parent=1 // loop_header_branch
      %198 = sbr.rel (%p196) target = $region48
    $region45: #{tpu_custom_call.1} parent=1 // loop_body
      %s200 = smul.u32 %s195, 2
      %s201 = scalar_lea.vmem [#allocation2], %s200
      %v202 = vld [vmem:[%s201] sm:$0x3]
      %v203 = vld [vmem:[#allocation3] sm:$0x3]
      %v204 = vpack.c.bf16 %v203, %v203
      %v209 = vunpack.c.l.b16 %v187
      %v210 = vunpack.c.l.b16 %v188
      %v211 = vunpack.c.l.b16 %v189
      %v212 = vunpack.c.l.b16 %v190
      %v213 = vpack.c.b16 %v210, %v209
      %v214 = vpack.c.b16 %v212, %v211
      %v218 = vsel %vm136, %v204, 0
      %220 = vmatpush.bf16.msra.mxu0 0
      %221 = vmatpush.bf16.msra.mxu0 0
      %222 = vmatpush.bf16.msra.mxu0 0
      %223 = vmatpush.bf16.msra.mxu0 0
      %224 = vmatpush.bf16.msra.mxu0 0
      %225 = vmatpush.bf16.msra.mxu0 0
      %226 = vmatpush.bf16.msra.mxu0 %v214
      %227 = vmatpush.bf16.msra.mxu0 %v213
      %228 = vmatmul.bf16.gmra.mxu0 %v218
      %v229 = vpop.f32.mrf.mxu0
      %v230 = vadd.f32 0.0, %v229
      %v231 = vpop.f32.mrf.mxu0
      %232 = vdwg.mxu0
      %v233 = vadd.f32 %v202, %v230
      %v234 = vxor.u32 %v233, 2147483648
      %v235 = vmul.f32 %v234, 1.442695
      %v236 = vpow.pop %v235
      %v237 = vadd.f32 %v236, 1.0
      %v238 = vrcp.pop %v237
      %v239 = vmul.f32 %v237, %v238
      %v240 = vsub.f32 1.0, %v239
      %v241 = vmul.f32 %v238, %v240
      %v242 = vadd.f32 %v238, %v241
      %vm243 = vweird.f32 %v237
      %vm244 = vweird.f32 %v238
      %vm245 = vmor %vm243, %vm244
      %v246 = vsel %vm245, %v238, %v242
      %v247 = vand.u32 2147483647, %v237
      %vm248 = vcmp.eq.f32.partialorder %v247, 8.507059e+37
      %v249 = vand.u32 %v237, 2147483648
      %v250 = vor.u32 1.1754944e-38, %v249
      %v251 = vsel %vm248, %v250, %v246
      %v252 = vmul.f32 1.0, %v251
      %v253 = vtanh.pop %v233
      %v254 = vld [vmem:[#allocation4] sm:$0x3]
      %256 = vrot.lane.b32.xlu0 %v254, 32
      %v257 = vpop.permute.xlu0 %256
      %v259 = vmul.f32 %v252, %v257
      %261 = vrot.lane.b32.xlu0 %v253, 64
      %v262 = vpop.permute.xlu0 %261
      %v264 = vmul.f32 %v252, %v262
      %266 = vrot.lane.b32.xlu0 %v264, 32
      %v267 = vpop.permute.xlu0 %266
      %v269 = vadd.f32 %v259, %v267
      %v270 = vtanh.pop %v269
      %272 = vrot.lane.b32.xlu0 %v270, 64
      %v273 = vpop.permute.xlu0 %272
      %v275 = vmul.f32 %v252, %v273
      %277 = vrot.lane.b32.xlu0 %v269, 96
      %v278 = vpop.permute.xlu0 %277
      %280 = vst.msk [vmem:[#allocation4] sm:$0x3] %vm191, %v278
      %282 = vrot.lane.b32.xlu0 %v275, 32
      %v283 = vpop.permute.xlu0 %282
      %285 = vst.msk [vmem:[#allocation3] sm:$0x3] %vm191, %v283
      %s286 = scalar_lea.vmem [#allocation13], %s200
      %287 = vst.msk [vmem:[%s286] sm:$0x3] %vm191, %v283
    $region46: #{tpu_custom_call.1} parent=1 // loop_footer
      %s199 = sadd.s32 1, %s195
    $region47: #{tpu_custom_call.1} parent=1 // loop_footer_branch
      %194 = sbr.rel target = $region43
    $region48: #{tpu_custom_call.1} parent=1 // loop_exit
      _
    %v288 = vld [vmem:[#allocation13] sm:$0x3]
    %v289 = vld [vmem:[#allocation13 + $0x2] sm:$0x3]
    %v290 = vld [vmem:[#allocation13 + $0x4] sm:$0x3]
    %v291 = vld [vmem:[#allocation13 + $0x6] sm:$0x3]
    %v292 = vld [vmem:[#allocation13 + $0x8] sm:$0x3]
    %v293 = vld [vmem:[#allocation13 + $0xa] sm:$0x3]
    %v294 = vld [vmem:[#allocation13 + $0xc] sm:$0x3]
    %v295 = vld [vmem:[#allocation13 + $0xe] sm:$0x3]
    %v296 = vpack.c.bf16 %v288, %v288
    %v297 = vpack.c.bf16 %v289, %v289
    %v298 = vpack.c.bf16 %v290, %v290
    %v299 = vpack.c.bf16 %v291, %v291
    %v300 = vpack.c.bf16 %v292, %v292
    %v301 = vpack.c.bf16 %v293, %v293
    %v302 = vpack.c.bf16 %v294, %v294
    %v303 = vpack.c.bf16 %v295, %v295
    %s304 = scalar_lea.vmem [#allocation8], 16
    %v305 = vld [vmem:[%s304] sm:$0xf]
    %v306 = vld [vmem:[%s304 + $0x4] sm:$0xf]
    %v307 = vld [vmem:[%s304 + $0x8] sm:$0xf]
    %v308 = vld [vmem:[%s304 + $0xc] sm:$0xf]
    %310 = vst [vmem:[#allocation1] ss:$9 sm:$0xff] %v296
    %s312 = scalar_lea.vmem [#allocation1], 1
    %313 = vst [vmem:[%s312] ss:$9 sm:$0xff] %v297
    %s315 = scalar_lea.vmem [#allocation1], 2
    %316 = vst [vmem:[%s315] ss:$9 sm:$0xff] %v298
    %s318 = scalar_lea.vmem [#allocation1], 3
    %319 = vst [vmem:[%s318] ss:$9 sm:$0xff] %v299
    %s321 = scalar_lea.vmem [#allocation1], 4
    %322 = vst [vmem:[%s321] ss:$9 sm:$0xff] %v300
    %s324 = scalar_lea.vmem [#allocation1], 5
    %325 = vst [vmem:[%s324] ss:$9 sm:$0xff] %v301
    %s327 = scalar_lea.vmem [#allocation1], 6
    %328 = vst [vmem:[%s327] ss:$9 sm:$0xff] %v302
    %s330 = scalar_lea.vmem [#allocation1], 7
    %331 = vst [vmem:[%s330] ss:$9 sm:$0xff] %v303
    %v332 = vld [vmem:[#allocation1] sm:$0xff]
    %v337 = vunpack.c.l.b16 %v305
    %v338 = vunpack.c.l.b16 %v306
    %v339 = vunpack.c.l.b16 %v307
    %v340 = vunpack.c.l.b16 %v308
    %v341 = vpack.c.b16 %v338, %v337
    %v342 = vpack.c.b16 %v340, %v339
    %v345 = vsel %vm136, %v332, 0
    %347 = vmatpush.bf16.msra.mxu0 0
    %348 = vmatpush.bf16.msra.mxu0 0
    %349 = vmatpush.bf16.msra.mxu0 0
    %350 = vmatpush.bf16.msra.mxu0 0
    %351 = vmatpush.bf16.msra.mxu0 0
    %352 = vmatpush.bf16.msra.mxu0 0
    %353 = vmatpush.bf16.msra.mxu0 %v342
    %354 = vmatpush.bf16.msra.mxu0 %v341
    %355 = vmatmul.bf16.gmra.mxu0 %v345
    %v356 = vpop.f32.mrf.mxu0
    %v357 = vadd.f32 0.0, %v356
    %v358 = vpop.f32.mrf.mxu0
    %v359 = vadd.f32 0.0, %v358
    %360 = vdwg.mxu0
    %v363 = vrot.slane %v357, 2
    %v364 = vrot.slane %v357, 4
    %v365 = vrot.slane %v357, 6
    %v366 = vrot.slane %v359, 2
    %v367 = vrot.slane %v359, 4
    %v368 = vrot.slane %v359, 6
    %s375 = scalar_lea.vmem %s3, 1
    %v376 = vld [vmem:[%s375] sm:$0x1]
    %v378 = vperm.slane %v376, 0
    %v380 = vadd.f32 %v357, %v378
    %v381 = vadd.f32 %v363, %v378
    %v382 = vadd.f32 %v364, %v378
    %v383 = vadd.f32 %v365, %v378
    %v384 = vadd.f32 %v359, %v378
    %v385 = vadd.f32 %v366, %v378
    %v386 = vadd.f32 %v367, %v378
    %v387 = vadd.f32 %v368, %v378
    %388 = vst [vmem:[#allocation2] sm:$0x3] %v380
    %389 = vst [vmem:[#allocation2 + $0x2] sm:$0x3] %v381
    %390 = vst [vmem:[#allocation2 + $0x4] sm:$0x3] %v382
    %391 = vst [vmem:[#allocation2 + $0x6] sm:$0x3] %v383
    %392 = vst [vmem:[#allocation2 + $0x8] sm:$0x3] %v384
    %393 = vst [vmem:[#allocation2 + $0xa] sm:$0x3] %v385
    %394 = vst [vmem:[#allocation2 + $0xc] sm:$0x3] %v386
    %395 = vst [vmem:[#allocation2 + $0xe] sm:$0x3] %v387
    %s396 = scalar_lea.vmem [#allocation10], 16
    %v397 = vld [vmem:[%s396] sm:$0xf]
    %v398 = vld [vmem:[%s396 + $0x4] sm:$0xf]
    %v399 = vld [vmem:[%s396 + $0x8] sm:$0xf]
    %v400 = vld [vmem:[%s396 + $0xc] sm:$0xf]
    %401 = vst.msk [vmem:[#allocation3] sm:$0x3] %vm191, 0.0
    %402 = vst.msk [vmem:[#allocation4] sm:$0x3] %vm191, 0.0
    loop: start=0, step=1, limit=8
    $region49: #{tpu_custom_call.1} parent=1 // loop_pre_header
      _
    $region50: #{tpu_custom_call.1} parent=1 // loop_header
      %s404 = sphi 0, %s408
      %p405 = scmp.ge.s32.totalorder %s404, 8
    $region51: #{tpu_custom_call.1} parent=1 // loop_header_branch
      %407 = sbr.rel (%p405) target = $region55
    $region52: #{tpu_custom_call.1} parent=1 // loop_body
      %s409 = smul.u32 %s404, 2
      %s410 = scalar_lea.vmem [#allocation2], %s409
      %v411 = vld [vmem:[%s410] sm:$0x3]
      %v412 = vld [vmem:[#allocation3] sm:$0x3]
      %v413 = vpack.c.bf16 %v412, %v412
      %v418 = vunpack.c.l.b16 %v397
      %v419 = vunpack.c.l.b16 %v398
      %v420 = vunpack.c.l.b16 %v399
      %v421 = vunpack.c.l.b16 %v400
      %v422 = vpack.c.b16 %v419, %v418
      %v423 = vpack.c.b16 %v421, %v420
      %v427 = vsel %vm136, %v413, 0
      %429 = vmatpush.bf16.msra.mxu0 0
      %430 = vmatpush.bf16.msra.mxu0 0
      %431 = vmatpush.bf16.msra.mxu0 0
      %432 = vmatpush.bf16.msra.mxu0 0
      %433 = vmatpush.bf16.msra.mxu0 0
      %434 = vmatpush.bf16.msra.mxu0 0
      %435 = vmatpush.bf16.msra.mxu0 %v423
      %436 = vmatpush.bf16.msra.mxu0 %v422
      %437 = vmatmul.bf16.gmra.mxu0 %v427
      %v438 = vpop.f32.mrf.mxu0
      %v439 = vadd.f32 0.0, %v438
      %v440 = vpop.f32.mrf.mxu0
      %441 = vdwg.mxu0
      %v442 = vadd.f32 %v411, %v439
      %v443 = vxor.u32 %v442, 2147483648
      %v444 = vmul.f32 %v443, 1.442695
      %v445 = vpow.pop %v444
      %v446 = vadd.f32 %v445, 1.0
      %v447 = vrcp.pop %v446
      %v448 = vmul.f32 %v446, %v447
      %v449 = vsub.f32 1.0, %v448
      %v450 = vmul.f32 %v447, %v449
      %v451 = vadd.f32 %v447, %v450
      %vm452 = vweird.f32 %v446
      %vm453 = vweird.f32 %v447
      %vm454 = vmor %vm452, %vm453
      %v455 = vsel %vm454, %v447, %v451
      %v456 = vand.u32 2147483647, %v446
      %vm457 = vcmp.eq.f32.partialorder %v456, 8.507059e+37
      %v458 = vand.u32 %v446, 2147483648
      %v459 = vor.u32 1.1754944e-38, %v458
      %v460 = vsel %vm457, %v459, %v455
      %v461 = vmul.f32 1.0, %v460
      %v462 = vtanh.pop %v442
      %v463 = vld [vmem:[#allocation4] sm:$0x3]
      %465 = vrot.lane.b32.xlu0 %v463, 32
      %v466 = vpop.permute.xlu0 %465
      %v468 = vmul.f32 %v461, %v466
      %470 = vrot.lane.b32.xlu0 %v462, 64
      %v471 = vpop.permute.xlu0 %470
      %v473 = vmul.f32 %v461, %v471
      %475 = vrot.lane.b32.xlu0 %v473, 32
      %v476 = vpop.permute.xlu0 %475
      %v478 = vadd.f32 %v468, %v476
      %v479 = vtanh.pop %v478
      %481 = vrot.lane.b32.xlu0 %v479, 64
      %v482 = vpop.permute.xlu0 %481
      %v484 = vmul.f32 %v461, %v482
      %486 = vrot.lane.b32.xlu0 %v478, 96
      %v487 = vpop.permute.xlu0 %486
      %489 = vst.msk [vmem:[#allocation4] sm:$0x3] %vm191, %v487
      %491 = vrot.lane.b32.xlu0 %v484, 32
      %v492 = vpop.permute.xlu0 %491
      %494 = vst.msk [vmem:[#allocation3] sm:$0x3] %vm191, %v492
      %v495 = vpack.c.bf16 %v484, %v484
      %v496 = vld [vmem:[#allocation11] sm:$0xf]
      %v497 = vld [vmem:[#allocation11 + $0x4] sm:$0xf]
      %v498 = vld [vmem:[#allocation11 + $0x8] sm:$0xf]
      %v499 = vld [vmem:[#allocation11 + $0xc] sm:$0xf]
      %v500 = vld [vmem:[%s5] sm:$0x1]
      %v502 = vperm.slane %v500, 0
      %505 = vrot.lane.b32.xlu0 %v495, 32
      %v506 = vpop.permute.xlu0 %505
      %v511 = vunpack.c.l.b16 %v496
      %v512 = vunpack.c.l.b16 %v497
      %v513 = vunpack.c.l.b16 %v498
      %v514 = vunpack.c.l.b16 %v499
      %v515 = vpack.c.b16 %v512, %v511
      %v516 = vpack.c.b16 %v514, %v513
      %v520 = vsel %vm136, %v506, 0
      %522 = vmatpush.bf16.msra.mxu0 0
      %523 = vmatpush.bf16.msra.mxu0 0
      %524 = vmatpush.bf16.msra.mxu0 0
      %525 = vmatpush.bf16.msra.mxu0 0
      %526 = vmatpush.bf16.msra.mxu0 0
      %527 = vmatpush.bf16.msra.mxu0 0
      %528 = vmatpush.bf16.msra.mxu0 %v516
      %529 = vmatpush.bf16.msra.mxu0 %v515
      %530 = vmatmul.bf16.gmra.mxu0 %v520
      %v531 = vpop.f32.mrf.mxu0
      %v532 = vadd.f32 %v502, %v531
      %v533 = vpop.f32.mrf.mxu0
      %534 = vdwg.mxu0
      %v535 = vmax.f32 %v532, 0.0
      %s536 = scalar_lea.vmem [#allocation13], %s409
      %537 = vst.msk [vmem:[%s536] sm:$0x3] %vm191, %v535
    $region53: #{tpu_custom_call.1} parent=1 // loop_footer
      %s408 = sadd.s32 1, %s404
    $region54: #{tpu_custom_call.1} parent=1 // loop_footer_branch
      %403 = sbr.rel target = $region50
    $region55: #{tpu_custom_call.1} parent=1 // loop_exit
      _
    // Predicated region
    $region56: #{tpu_custom_call.1} parent=1 // pred_check
      _
    $region57: #{tpu_custom_call.1} parent=1 // pred_check_branch
      %539 = sbr.rel (0) target = $region59
    $region58: #{tpu_custom_call.1} parent=1 // pred_region
      %541 = vsyncadd [#allocation7], 0
      %s542 = sshll.u32 [#allocation13], 4
      %s543 = int_to_ptr.vmem [resolvable:$true] %s542
      %s544 = sshll.u32 %s6, 4
      %s545 = int_to_ptr.hbm [resolvable:$true] %s544
      %550 = dma.vmem_to_hbm [thread:$0]  %s543, 256, %s545, [#allocation7], 32, 32, 2
    $region59: #{tpu_custom_call.1} parent=1 // pred_fallthru
      _
    // Predicated region
    $region60: #{tpu_custom_call.1} parent=1 // pred_check
      _
    $region61: #{tpu_custom_call.1} parent=1 // pred_check_branch
      %552 = sbr.rel (0) target = $region63
    $region62: #{tpu_custom_call.1} parent=1 // pred_region
      %554 = dma.done [#allocation7], 256
    $region63: #{tpu_custom_call.1} parent=1 // pred_fallthru
      _
    %555 = vsyncpa [#allocation6], 1
    %556 = vsyncpa [#allocation9], 1
    %557 = vsyncpa [#allocation12], 1
    %558 = vsyncpa [#allocation7], 1

</llo_original>
